<compile_context>
chip_gen: v5e
topology: v5e:2x2
jax: 0.10.0
libtpu: 0.0.40
codegen_flags: <defaults>
</compile_context>

<pallas_src>
import jax
import jax.numpy as jnp
from jax import lax
from jax.experimental import pallas as pl
from jax.experimental.pallas import tpu as pltpu


def _make_kernel(precision):
    def complex_linear_kernel(xr_ref, xi_ref, wr_ref, wi_ref, real_ref, imag_ref):
        xr = xr_ref[...]
        xi = xi_ref[...]
        wr = wr_ref[...]
        wi = wi_ref[...]
        rr = jnp.dot(xr, wr, preferred_element_type=jnp.float32, precision=precision)
        ii = jnp.dot(xi, wi, preferred_element_type=jnp.float32, precision=precision)
        ir = jnp.dot(xi, wr, preferred_element_type=jnp.float32, precision=precision)
        ri = jnp.dot(xr, wi, preferred_element_type=jnp.float32, precision=precision)
        real_ref[...] = (rr - ii).astype(real_ref.dtype)
        imag_ref[...] = (ir + ri).astype(imag_ref.dtype)
    return complex_linear_kernel


def _round_up(x, m):
    return (x + m - 1) // m * m


def _vmem_limit_bytes():
    """Generation-aware scoped-VMEM limit (~3/4 of per-core VMEM)."""
    try:
        cap = pltpu.get_tpu_info().vmem_capacity_bytes
    except Exception:
        cap = 64 * 1024 * 1024  # conservative (v7x-sized) fallback
    return min((cap * 3) // 4, 100 * 1024 * 1024)


def _choose_tiles(M, K, Np, in_item, out_item, budget, sublane, max_tm):
    """Pick (tm, tn, Mp).

    tn is the largest multiple of 128 that divides Np and still leaves room
    for a reasonable batch tile; tm is derived from the resulting number of
    M tiles so M-padding is minimal. Everything is sized for double-buffered
    pipelining of x_real/x_imag/W_r^T/W_i^T/real/imag tiles.
    """
    for tn in range(Np, 0, -128):
        if Np % tn:
            continue
        w_bytes = 2 * (2 * K * tn * in_item)                         # both weights, 2x buffered
        per_row = 2 * (2 * K * in_item) + 2 * (2 * tn * out_item)    # x tiles + out tiles
        rows = (budget - w_bytes) // per_row
        if rows < sublane:
            continue
        tm_cap = min(max_tm, (rows // sublane) * sublane)
        n_m = pl.cdiv(M, tm_cap)
        # Give the second TensorCore (v7x) something to do if the whole
        # problem would otherwise be a single grid step.
        if n_m == 1 and Np // tn == 1 and M >= 2 * sublane:
            n_m = 2
        tm = _round_up(pl.cdiv(M, n_m), sublane)
        return tm, tn, n_m * tm
    # Fallback for pathologically large K (see TODO above).
    tm = _round_up(min(M, sublane), sublane)
    return tm, 128, _round_up(M, tm)


def pack_complex_linear_weights(w_real, w_imag, compute_dtype=None):
    """One-time weight packing (call at parameter init, NOT per forward).

    w_*: (out_features, in_features), PyTorch nn.Linear layout.
    Returns (wr_t, wi_t, out_features): each weight transposed to
    (in_features, Np) with Np = out_features rounded up to a lane-dense
    multiple of 128, cast to compute_dtype if given.
    """
    N, K = w_real.shape
    assert w_imag.shape == (N, K)
    cdt = jnp.dtype(compute_dtype) if compute_dtype is not None else jnp.dtype(w_real.dtype)
    Np = _round_up(N, 128)
    pad = Np - N

    def _prep(w):
        wt = w.T.astype(cdt)                                   # (K, N)
        return jnp.pad(wt, ((0, 0), (0, pad))) if pad else wt  # (K, Np)

    return _prep(w_real), _prep(w_imag), N


def complex_linear(x_real, x_imag, wr_t, wi_t, out_features, *,
                   precision=None, max_tm=1024):
    """x_*: (M, K); wr_t/wi_t: pre-packed (K, Np) from pack_complex_linear_weights.

    Returns (real, imag), each (M, out_features), matching the PyTorch module.
    """
    M, K = x_real.shape
    assert x_imag.shape == (M, K)
    Kw, Np = wr_t.shape
    assert Kw == K and wi_t.shape == (K, Np) and Np % 128 == 0
    N = out_features

    out_dtype = x_real.dtype
    cdt = jnp.dtype(wr_t.dtype)
    if precision is None:
        # Exact f32 semantics by default; bf16 compute uses the fast MXU path.
        precision = (lax.Precision.HIGHEST if cdt == jnp.float32
                     else lax.Precision.DEFAULT)

    in_item = cdt.itemsize
    out_item = jnp.dtype(out_dtype).itemsize
    sublane = max(8, 32 // in_item)            # 8 rows for f32, 16 for bf16

    limit = _vmem_limit_bytes()
    tm, tn, Mp = _choose_tiles(M, K, Np, in_item, out_item,
                               limit - 2 * 1024 * 1024, sublane, max_tm)

    xr = x_real.astype(cdt)
    xi = x_imag.astype(cdt)
    if Mp != M:
        xr = jnp.pad(xr, ((0, Mp - M), (0, 0)))
        xi = jnp.pad(xi, ((0, Mp - M), (0, 0)))

    ni, nj = Mp // tm, Np // tn

    # Keep the larger operand block-stationary over the inner grid axis.
    w_bytes = 2 * K * Np * in_item
    x_bytes = 2 * Mp * K * in_item
    if w_bytes >= x_bytes:
        grid = (nj, ni)                         # weight-stationary: N outer, M inner
        x_map = lambda j, i: (i, 0)
        w_map = lambda j, i: (0, j)
        o_map = lambda j, i: (i, j)
    else:
        grid = (ni, nj)                         # activation-stationary: M outer, N inner
        x_map = lambda i, j: (i, 0)
        w_map = lambda i, j: (0, j)
        o_map = lambda i, j: (i, j)

    cost = pl.CostEstimate(
        flops=8 * Mp * K * Np,                  # four (Mp,K)x(K,Np) matmuls
        transcendentals=0,
        bytes_accessed=(2 * Mp * K + 2 * K * Np) * in_item + 2 * Mp * Np * out_item,
    )

    real, imag = pl.pallas_call(
        _make_kernel(precision),
        out_shape=(jax.ShapeDtypeStruct((Mp, Np), out_dtype),
                   jax.ShapeDtypeStruct((Mp, Np), out_dtype)),
        grid_spec=pltpu.PrefetchScalarGridSpec(
            num_scalar_prefetch=0,
            grid=grid,
            in_specs=[
                pl.BlockSpec((tm, K), x_map),   # x_real tile
                pl.BlockSpec((tm, K), x_map),   # x_imag tile
                pl.BlockSpec((K, tn), w_map),   # W_r^T tile
                pl.BlockSpec((K, tn), w_map),   # W_i^T tile
            ],
            out_specs=[
                pl.BlockSpec((tm, tn), o_map),  # real
                pl.BlockSpec((tm, tn), o_map),  # imag
            ],
        ),
        compiler_params=pltpu.CompilerParams(
            dimension_semantics=("parallel", "parallel"),
            vmem_limit_bytes=limit,
        ),
        cost_estimate=cost,
    )(xr, xi, wr_t, wi_t)

    if Mp != M or Np != N:
        real = real[:M, :N]
        imag = imag[:M, :N]
    return real, imag


if __name__ == "__main__":
    # Small shapes consistent with the module: batch=8, in_features=32, out_features=32.
    batch, in_features, out_features = 8, 32, 32

    key = jax.random.PRNGKey(0)
    k_xr, k_xi, k_wr, k_wi = jax.random.split(key, 4)

    x_real = jax.random.normal(k_xr, (batch, in_features), dtype=jnp.float32)
    x_imag = jax.random.normal(k_xi, (batch, in_features), dtype=jnp.float32)

    # nn.Linear default init: U(-1/sqrt(in_features), 1/sqrt(in_features)),
    # weights in PyTorch (out_features, in_features) layout.
    bound = 1.0 / (in_features ** 0.5)
    w_real = jax.random.uniform(
        k_wr, (out_features, in_features), minval=-bound, maxval=bound, dtype=jnp.float32)
    w_imag = jax.random.uniform(
        k_wi, (out_features, in_features), minval=-bound, maxval=bound, dtype=jnp.float32)

    # One-time packing (would live next to the parameters in a real model).
    wr_t, wi_t, n_out = pack_complex_linear_weights(w_real, w_imag)

    real, imag = complex_linear(x_real, x_imag, wr_t, wi_t, n_out)
    jax.block_until_ready((real, imag))

    # Reference check (plain JAX) -- identical math to the PyTorch module.
    real_ref = x_real @ w_real.T - x_imag @ w_imag.T
    imag_ref = x_imag @ w_real.T + x_real @ w_imag.T
    assert real.shape == (batch, out_features) and imag.shape == (batch, out_features)
    assert jnp.allclose(real, real_ref, atol=1e-5, rtol=1e-5)
    assert jnp.allclose(imag, imag_ref, atol=1e-5, rtol=1e-5)

    print("KERNEL_OK")
</pallas_src>

<mosaic_0001>
module attributes {stable_mosaic.version = 11 : i64} {
  func.func @complex_linear_kernel(%arg0: i32, %arg1: i32, %arg2: memref<8x32xf32, #tpu.memory_space<vmem>>, %arg3: memref<8x32xf32, #tpu.memory_space<vmem>>, %arg4: memref<32x128xf32, #tpu.memory_space<vmem>>, %arg5: memref<32x128xf32, #tpu.memory_space<vmem>>, %arg6: memref<8x128xf32, #tpu.memory_space<vmem>>, %arg7: memref<8x128xf32, #tpu.memory_space<vmem>>) attributes {dimension_semantics = [#tpu.dimension_semantics<parallel>, #tpu.dimension_semantics<parallel>], iteration_bounds = array<i64: 1, 1>, scalar_prefetch = 0 : i64, scratch_operands = 0 : i64, tpu.core_type = #tpu.core_type<tc>, window_params = [{transform_indices = @transform_0, window_bounds = array<i64: 8, 32>}, {transform_indices = @transform_1, window_bounds = array<i64: 8, 32>}, {transform_indices = @transform_2, window_bounds = array<i64: 32, 128>}, {transform_indices = @transform_3, window_bounds = array<i64: 32, 128>}, {transform_indices = @transform_4, window_bounds = array<i64: 8, 128>}, {transform_indices = @transform_5, window_bounds = array<i64: 8, 128>}]} {
    %c0 = arith.constant 0 : index
    %c0_0 = arith.constant 0 : index
    %0 = vector.load %arg2[%c0, %c0_0] : memref<8x32xf32, #tpu.memory_space<vmem>>, vector<8x32xf32>
    %c0_1 = arith.constant 0 : index
    %c0_2 = arith.constant 0 : index
    %1 = vector.load %arg3[%c0_1, %c0_2] : memref<8x32xf32, #tpu.memory_space<vmem>>, vector<8x32xf32>
    %c0_3 = arith.constant 0 : index
    %c0_4 = arith.constant 0 : index
    %2 = vector.load %arg4[%c0_3, %c0_4] : memref<32x128xf32, #tpu.memory_space<vmem>>, vector<32x128xf32>
    %c0_5 = arith.constant 0 : index
    %c0_6 = arith.constant 0 : index
    %3 = vector.load %arg5[%c0_5, %c0_6] : memref<32x128xf32, #tpu.memory_space<vmem>>, vector<32x128xf32>
    %cst = arith.constant dense<0.000000e+00> : vector<8x128xf32>
    %4 = tpu.matmul %0, %2, %cst {dimension_numbers = #tpu.dot_dimension_numbers<[1], [0], [0], [1], [0, 0, 1, 1], [], []>, precision = #tpu.contract_precision<fp32>} : vector<8x32xf32>, vector<32x128xf32>, vector<8x128xf32> -> vector<8x128xf32>
    %cst_7 = arith.constant dense<0.000000e+00> : vector<8x128xf32>
    %5 = tpu.matmul %1, %3, %cst_7 {dimension_numbers = #tpu.dot_dimension_numbers<[1], [0], [0], [1], [0, 0, 1, 1], [], []>, precision = #tpu.contract_precision<fp32>} : vector<8x32xf32>, vector<32x128xf32>, vector<8x128xf32> -> vector<8x128xf32>
    %cst_8 = arith.constant dense<0.000000e+00> : vector<8x128xf32>
    %6 = tpu.matmul %1, %2, %cst_8 {dimension_numbers = #tpu.dot_dimension_numbers<[1], [0], [0], [1], [0, 0, 1, 1], [], []>, precision = #tpu.contract_precision<fp32>} : vector<8x32xf32>, vector<32x128xf32>, vector<8x128xf32> -> vector<8x128xf32>
    %cst_9 = arith.constant dense<0.000000e+00> : vector<8x128xf32>
    %7 = tpu.matmul %0, %3, %cst_9 {dimension_numbers = #tpu.dot_dimension_numbers<[1], [0], [0], [1], [0, 0, 1, 1], [], []>, precision = #tpu.contract_precision<fp32>} : vector<8x32xf32>, vector<32x128xf32>, vector<8x128xf32> -> vector<8x128xf32>
    %8 = arith.subf %4, %5 : vector<8x128xf32>
    %c0_10 = arith.constant 0 : index
    %c0_11 = arith.constant 0 : index
    %9 = vector.load %arg6[%c0_10, %c0_11] : memref<8x128xf32, #tpu.memory_space<vmem>>, vector<8x128xf32>
    tpu.vector_store %arg6[%c0_10, %c0_11], %8 {strides = array<i32>} : memref<8x128xf32, #tpu.memory_space<vmem>>, vector<8x128xf32>,
    %10 = arith.addf %6, %7 : vector<8x128xf32>
    %c0_12 = arith.constant 0 : index
    %c0_13 = arith.constant 0 : index
    %11 = vector.load %arg7[%c0_12, %c0_13] : memref<8x128xf32, #tpu.memory_space<vmem>>, vector<8x128xf32>
    tpu.vector_store %arg7[%c0_12, %c0_13], %10 {strides = array<i32>} : memref<8x128xf32, #tpu.memory_space<vmem>>, vector<8x128xf32>,
    return
  }
  func.func @transform_0(%arg0: i32, %arg1: i32) -> (i32, i32) {
    %c0_i32 = arith.constant 0 : i32
    %c0_i32_0 = arith.constant 0 : i32
    return %arg1, %c0_i32 : i32, i32
  }
  func.func @transform_1(%arg0: i32, %arg1: i32) -> (i32, i32) {
    %c0_i32 = arith.constant 0 : i32
    %c0_i32_0 = arith.constant 0 : i32
    return %arg1, %c0_i32 : i32, i32
  }
  func.func @transform_2(%arg0: i32, %arg1: i32) -> (i32, i32) {
    %c0_i32 = arith.constant 0 : i32
    %c0_i32_0 = arith.constant 0 : i32
    return %c0_i32, %arg0 : i32, i32
  }
  func.func @transform_3(%arg0: i32, %arg1: i32) -> (i32, i32) {
    %c0_i32 = arith.constant 0 : i32
    %c0_i32_0 = arith.constant 0 : i32
    return %c0_i32, %arg0 : i32, i32
  }
  func.func @transform_4(%arg0: i32, %arg1: i32) -> (i32, i32) {
    %c0_i32 = arith.constant 0 : i32
    return %arg1, %arg0 : i32, i32
  }
  func.func @transform_5(%arg0: i32, %arg1: i32) -> (i32, i32) {
    %c0_i32 = arith.constant 0 : i32
    return %arg1, %arg0 : i32, i32
  }
}

</mosaic_0001>

<llo_original>
// kernel: tpu_custom_call.1
$region0: #{tpu_custom_call.1}
  #allocation0 [shape = 'u32[]', space=smem, size = 0x4, offset = 0x4, fixed_abs, tag = 'smem constant byte address 0x4 - core index']
  #allocation1 [shape = 'u32[72,128]{1,0:T(1,128)}', space=vmem, size = 0x9000, scoped, tag = 'internal scratch']
  %s0 = inlined_call_operand.hbm [shape: f32[8,32], index: 0, kind: input, shape index: {}]
  %s1 = inlined_call_operand.hbm [shape: f32[8,32], index: 1, kind: input, shape index: {}]
  %s2 = inlined_call_operand.hbm [shape: f32[32,128], index: 2, kind: input, shape index: {}]
  %s3 = inlined_call_operand.hbm [shape: f32[32,128], index: 3, kind: input, shape index: {}]
  %s4 = inlined_call_operand.hbm [shape: f32[8,128], index: 4, kind: output, shape index: {0}]
  %s5 = inlined_call_operand.hbm [shape: f32[8,128], index: 5, kind: output, shape index: {1}]
  %6 = xla_tuple %s4, %s5
  %s7 = sld [smem:[#allocation0]]
  $region50: #{tpu_custom_call.1} parent=0
    _
  %s9 = ssub.s32 1, %s7
  %s10 = scalar_select 0, %s9, %s7
  $region1: #{tpu_custom_call.1} parent=0
    #allocation2 [shape = 'u8[4096]{0}', space=vmem, size = 0x1000, scoped, tag = 'input window, operand 0, single buffered']
    #allocation3 [shape = 's32[1]{0}', space=sflag, size = 0x4, scoped, tag = 'scoped memory for tpu_custom_call.1']
    #allocation4 [shape = 's32[1]{0}', space=sflag, size = 0x4, scoped, tag = 'scoped memory for tpu_custom_call.1']
    #allocation5 [shape = 'u8[4096]{0}', space=vmem, size = 0x1000, scoped, tag = 'input window, operand 1, single buffered']
    #allocation6 [shape = 's32[1]{0}', space=sflag, size = 0x4, scoped, tag = 'scoped memory for tpu_custom_call.1']
    #allocation7 [shape = 'u8[16384]{0}', space=vmem, size = 0x4000, scoped, tag = 'input window, operand 2, single buffered']
    #allocation8 [shape = 'u8[16384]{0}', space=vmem, size = 0x4000, scoped, tag = 'input window, operand 3, single buffered']
    #allocation9 [shape = 's32[1]{0}', space=sflag, size = 0x4, scoped, tag = 'scoped memory for tpu_custom_call.1']
    #allocation10 [shape = 'u8[4096]{0}', space=vmem, size = 0x1000, scoped, tag = 'output window, operand 0, single buffered']
    #allocation11 [shape = 'u8[4096]{0}', space=vmem, size = 0x1000, scoped, tag = 'output window, operand 1, single buffered']
    #allocation12 [shape = 's32[1]{0}', space=sflag, size = 0x4, scoped, tag = 'scoped memory for tpu_custom_call.1']
    %11 = vsyncpa [#allocation3], 0
    %12 = vsyncpa [#allocation6], 0
    %13 = vsyncpa [#allocation9], 0
    %14 = vsyncpa [#allocation4], 0
    %15 = vsyncpa [#allocation12], 0
    // Predicated region
    $region2: #{tpu_custom_call.1} parent=1 // pred_check
      _
    $region3: #{tpu_custom_call.1} parent=1 // pred_check_branch
      %17 = sbr.rel (0) target = $region5
    $region4: #{tpu_custom_call.1} parent=1 // pred_region
      %19 = vsyncadd [#allocation3], 0
      %s21 = sshll.u32 %s0, 4
      %s22 = int_to_ptr.hbm [resolvable:$true] %s21
      %s23 = sshll.u32 [#allocation2], 4
      %s24 = int_to_ptr.vmem [resolvable:$true] %s23
      %26 = dma.hbm_to_vmem [thread:$0]  %s22, 128, %s24, [#allocation3]
    $region5: #{tpu_custom_call.1} parent=1 // pred_fallthru
      _
    // Predicated region
    $region6: #{tpu_custom_call.1} parent=1 // pred_check
      _
    $region7: #{tpu_custom_call.1} parent=1 // pred_check_branch
      %28 = sbr.rel (0) target = $region9
    $region8: #{tpu_custom_call.1} parent=1 // pred_region
      %30 = vsyncadd [#allocation6], 0
      %s32 = sshll.u32 %s1, 4
      %s33 = int_to_ptr.hbm [resolvable:$true] %s32
      %s34 = sshll.u32 [#allocation5], 4
      %s35 = int_to_ptr.vmem [resolvable:$true] %s34
      %37 = dma.hbm_to_vmem [thread:$0]  %s33, 128, %s35, [#allocation6]
    $region9: #{tpu_custom_call.1} parent=1 // pred_fallthru
      _
    // Predicated region
    $region10: #{tpu_custom_call.1} parent=1 // pred_check
      _
    $region11: #{tpu_custom_call.1} parent=1 // pred_check_branch
      %39 = sbr.rel (0) target = $region13
    $region12: #{tpu_custom_call.1} parent=1 // pred_region
      %41 = vsyncadd [#allocation6], 0
      %s42 = sshll.u32 %s2, 4
      %s43 = int_to_ptr.hbm [resolvable:$true] %s42
      %s44 = sshll.u32 [#allocation7], 4
      %s45 = int_to_ptr.vmem [resolvable:$true] %s44
      %50 = dma.hbm_to_vmem [thread:$0]  %s43, 512, %s45, [#allocation6], 128, 128, 8
    $region13: #{tpu_custom_call.1} parent=1 // pred_fallthru
      _
    // Predicated region
    $region14: #{tpu_custom_call.1} parent=1 // pred_check
      _
    $region15: #{tpu_custom_call.1} parent=1 // pred_check_branch
      %52 = sbr.rel (0) target = $region17
    $region16: #{tpu_custom_call.1} parent=1 // pred_region
      %54 = vsyncadd [#allocation9], 0
      %s55 = sshll.u32 %s3, 4
      %s56 = int_to_ptr.hbm [resolvable:$true] %s55
      %s57 = sshll.u32 [#allocation8], 4
      %s58 = int_to_ptr.vmem [resolvable:$true] %s57
      %63 = dma.hbm_to_vmem [thread:$0]  %s56, 512, %s58, [#allocation9], 128, 128, 8
    $region17: #{tpu_custom_call.1} parent=1 // pred_fallthru
      _
    // Predicated region
    $region18: #{tpu_custom_call.1} parent=1 // pred_check
      _
    $region19: #{tpu_custom_call.1} parent=1 // pred_check_branch
      %65 = sbr.rel (0) target = $region21
    $region20: #{tpu_custom_call.1} parent=1 // pred_region
      %67 = dma.done [#allocation3], 128
    $region21: #{tpu_custom_call.1} parent=1 // pred_fallthru
      _
    // Predicated region
    $region22: #{tpu_custom_call.1} parent=1 // pred_check
      _
    $region23: #{tpu_custom_call.1} parent=1 // pred_check_branch
      %69 = sbr.rel (0) target = $region25
    $region24: #{tpu_custom_call.1} parent=1 // pred_region
      %71 = dma.done [#allocation6], 128
    $region25: #{tpu_custom_call.1} parent=1 // pred_fallthru
      _
    // Predicated region
    $region26: #{tpu_custom_call.1} parent=1 // pred_check
      _
    $region27: #{tpu_custom_call.1} parent=1 // pred_check_branch
      %73 = sbr.rel (0) target = $region29
    $region28: #{tpu_custom_call.1} parent=1 // pred_region
      %75 = dma.done [#allocation6], 512
    $region29: #{tpu_custom_call.1} parent=1 // pred_fallthru
      _
    // Predicated region
    $region30: #{tpu_custom_call.1} parent=1 // pred_check
      _
    $region31: #{tpu_custom_call.1} parent=1 // pred_check_branch
      %77 = sbr.rel (0) target = $region33
    $region32: #{tpu_custom_call.1} parent=1 // pred_region
      %79 = dma.done [#allocation9], 512
    $region33: #{tpu_custom_call.1} parent=1 // pred_fallthru
      _
    %v80 = vld [vmem:[#allocation2] sm:$0xff]
    %v81 = vld [vmem:[#allocation5] sm:$0xff]
    %v82 = vld [vmem:[#allocation7] sm:$0xff]
    %v83 = vld [vmem:[#allocation7 + $0x8] sm:$0xff]
    %v84 = vld [vmem:[#allocation7 + $0x10] sm:$0xff]
    %v85 = vld [vmem:[#allocation7 + $0x18] sm:$0xff]
    %v86 = vld [vmem:[#allocation8] sm:$0xff]
    %v87 = vld [vmem:[#allocation8 + $0x8] sm:$0xff]
    %v88 = vld [vmem:[#allocation8 + $0x10] sm:$0xff]
    %v89 = vld [vmem:[#allocation8 + $0x18] sm:$0xff]
    %vm90 = vcmask 261120
    %v92 = vsel %vm90, %v80, 0
    %94 = vmatpush.msra.mxu0 0.0
    %95 = vmatpush.msra.mxu0 0.0
    %96 = vmatpush.msra.mxu0 0.0
    %97 = vmatpush.msra.mxu0 0.0
    %98 = vmatpush.msra.mxu0 0.0
    %99 = vmatpush.msra.mxu0 0.0
    %100 = vmatpush.msra.mxu0 0.0
    %101 = vmatpush.msra.mxu0 0.0
    %102 = vmatpush.msra.mxu0 0.0
    %103 = vmatpush.msra.mxu0 0.0
    %104 = vmatpush.msra.mxu0 0.0
    %105 = vmatpush.msra.mxu0 0.0
    %v106 = vand.u32 %v85, 4294901760
    %107 = vmatpush.msra.mxu0 %v106
    %v108 = vand.u32 %v84, 4294901760
    %109 = vmatpush.msra.mxu0 %v108
    %v110 = vand.u32 %v83, 4294901760
    %111 = vmatpush.msra.mxu0 %v110
    %v112 = vand.u32 %v82, 4294901760
    %113 = vmatpush.msra.mxu0 %v112
    %v114 = vand.u32 %v92, 4294901760
    %v115 = vsub.f32 %v92, %v114
    %v116 = vand.u32 %v115, 4294901760
    %v117 = vsub.f32 %v115, %v116
    %v118 = vand.u32 %v117, 4294901760
    %119 = vmatmul.f32.gmra.mxu0 %v118
    %v120 = vpop.f32.mrf.mxu0
    %v121 = vadd.f32 0.0, %v120
    %122 = vdwg.mxu0
    %123 = vmatpush.msra.mxu0 0.0
    %124 = vmatpush.msra.mxu0 0.0
    %125 = vmatpush.msra.mxu0 0.0
    %126 = vmatpush.msra.mxu0 0.0
    %127 = vmatpush.msra.mxu0 0.0
    %128 = vmatpush.msra.mxu0 0.0
    %129 = vmatpush.msra.mxu0 0.0
    %130 = vmatpush.msra.mxu0 0.0
    %131 = vmatpush.msra.mxu0 0.0
    %132 = vmatpush.msra.mxu0 0.0
    %133 = vmatpush.msra.mxu0 0.0
    %134 = vmatpush.msra.mxu0 0.0
    %v135 = vand.u32 %v85, 4294901760
    %v136 = vsub.f32 %v85, %v135
    %v137 = vand.u32 %v136, 4294901760
    %v138 = vsub.f32 %v136, %v137
    %v139 = vand.u32 %v138, 4294901760
    %140 = vmatpush.msra.mxu0 %v139
    %v141 = vand.u32 %v84, 4294901760
    %v142 = vsub.f32 %v84, %v141
    %v143 = vand.u32 %v142, 4294901760
    %v144 = vsub.f32 %v142, %v143
    %v145 = vand.u32 %v144, 4294901760
    %146 = vmatpush.msra.mxu0 %v145
    %v147 = vand.u32 %v83, 4294901760
    %v148 = vsub.f32 %v83, %v147
    %v149 = vand.u32 %v148, 4294901760
    %v150 = vsub.f32 %v148, %v149
    %v151 = vand.u32 %v150, 4294901760
    %152 = vmatpush.msra.mxu0 %v151
    %v153 = vand.u32 %v82, 4294901760
    %v154 = vsub.f32 %v82, %v153
    %v155 = vand.u32 %v154, 4294901760
    %v156 = vsub.f32 %v154, %v155
    %v157 = vand.u32 %v156, 4294901760
    %158 = vmatpush.msra.mxu0 %v157
    %v159 = vand.u32 %v92, 4294901760
    %160 = vmatmul.f32.gmra.mxu0 %v159
    %v161 = vpop.f32.mrf.mxu0
    %v162 = vadd.f32 %v121, %v161
    %163 = vdwg.mxu0
    %164 = vmatpush.msra.mxu0 0.0
    %165 = vmatpush.msra.mxu0 0.0
    %166 = vmatpush.msra.mxu0 0.0
    %167 = vmatpush.msra.mxu0 0.0
    %168 = vmatpush.msra.mxu0 0.0
    %169 = vmatpush.msra.mxu0 0.0
    %170 = vmatpush.msra.mxu0 0.0
    %171 = vmatpush.msra.mxu0 0.0
    %172 = vmatpush.msra.mxu0 0.0
    %173 = vmatpush.msra.mxu0 0.0
    %174 = vmatpush.msra.mxu0 0.0
    %175 = vmatpush.msra.mxu0 0.0
    %v176 = vand.u32 %v85, 4294901760
    %v177 = vsub.f32 %v85, %v176
    %178 = vmatpush.msra.mxu0 %v177
    %v179 = vand.u32 %v84, 4294901760
    %v180 = vsub.f32 %v84, %v179
    %181 = vmatpush.msra.mxu0 %v180
    %v182 = vand.u32 %v83, 4294901760
    %v183 = vsub.f32 %v83, %v182
    %184 = vmatpush.msra.mxu0 %v183
    %v185 = vand.u32 %v82, 4294901760
    %v186 = vsub.f32 %v82, %v185
    %187 = vmatpush.msra.mxu0 %v186
    %v188 = vand.u32 %v92, 4294901760
    %v189 = vsub.f32 %v92, %v188
    %190 = vmatmul.f32.gmra.mxu0 %v189
    %v191 = vpop.f32.mrf.mxu0
    %v192 = vadd.f32 %v162, %v191
    %193 = vdwg.mxu0
    %194 = vmatpush.msra.mxu0 0.0
    %195 = vmatpush.msra.mxu0 0.0
    %196 = vmatpush.msra.mxu0 0.0
    %197 = vmatpush.msra.mxu0 0.0
    %198 = vmatpush.msra.mxu0 0.0
    %199 = vmatpush.msra.mxu0 0.0
    %200 = vmatpush.msra.mxu0 0.0
    %201 = vmatpush.msra.mxu0 0.0
    %202 = vmatpush.msra.mxu0 0.0
    %203 = vmatpush.msra.mxu0 0.0
    %204 = vmatpush.msra.mxu0 0.0
    %205 = vmatpush.msra.mxu0 0.0
    %v206 = vand.u32 %v85, 4294901760
    %207 = vmatpush.msra.mxu0 %v206
    %v208 = vand.u32 %v84, 4294901760
    %209 = vmatpush.msra.mxu0 %v208
    %v210 = vand.u32 %v83, 4294901760
    %211 = vmatpush.msra.mxu0 %v210
    %v212 = vand.u32 %v82, 4294901760
    %213 = vmatpush.msra.mxu0 %v212
    %v214 = vand.u32 %v92, 4294901760
    %v215 = vsub.f32 %v92, %v214
    %v216 = vand.u32 %v215, 4294901760
    %217 = vmatmul.f32.gmra.mxu0 %v216
    %v218 = vpop.f32.mrf.mxu0
    %v219 = vadd.f32 %v192, %v218
    %220 = vdwg.mxu0
    %221 = vmatpush.msra.mxu0 0.0
    %222 = vmatpush.msra.mxu0 0.0
    %223 = vmatpush.msra.mxu0 0.0
    %224 = vmatpush.msra.mxu0 0.0
    %225 = vmatpush.msra.mxu0 0.0
    %226 = vmatpush.msra.mxu0 0.0
    %227 = vmatpush.msra.mxu0 0.0
    %228 = vmatpush.msra.mxu0 0.0
    %229 = vmatpush.msra.mxu0 0.0
    %230 = vmatpush.msra.mxu0 0.0
    %231 = vmatpush.msra.mxu0 0.0
    %232 = vmatpush.msra.mxu0 0.0
    %v233 = vand.u32 %v85, 4294901760
    %v234 = vsub.f32 %v85, %v233
    %v235 = vand.u32 %v234, 4294901760
    %236 = vmatpush.msra.mxu0 %v235
    %v237 = vand.u32 %v84, 4294901760
    %v238 = vsub.f32 %v84, %v237
    %v239 = vand.u32 %v238, 4294901760
    %240 = vmatpush.msra.mxu0 %v239
    %v241 = vand.u32 %v83, 4294901760
    %v242 = vsub.f32 %v83, %v241
    %v243 = vand.u32 %v242, 4294901760
    %244 = vmatpush.msra.mxu0 %v243
    %v245 = vand.u32 %v82, 4294901760
    %v246 = vsub.f32 %v82, %v245
    %v247 = vand.u32 %v246, 4294901760
    %248 = vmatpush.msra.mxu0 %v247
    %v249 = vand.u32 %v92, 4294901760
    %250 = vmatmul.f32.gmra.mxu0 %v249
    %v251 = vpop.f32.mrf.mxu0
    %v252 = vadd.f32 %v219, %v251
    %253 = vdwg.mxu0
    %254 = vmatpush.msra.mxu0 0.0
    %255 = vmatpush.msra.mxu0 0.0
    %256 = vmatpush.msra.mxu0 0.0
    %257 = vmatpush.msra.mxu0 0.0
    %258 = vmatpush.msra.mxu0 0.0
    %259 = vmatpush.msra.mxu0 0.0
    %260 = vmatpush.msra.mxu0 0.0
    %261 = vmatpush.msra.mxu0 0.0
    %262 = vmatpush.msra.mxu0 0.0
    %263 = vmatpush.msra.mxu0 0.0
    %264 = vmatpush.msra.mxu0 0.0
    %265 = vmatpush.msra.mxu0 0.0
    %v266 = vand.u32 %v85, 4294901760
    %267 = vmatpush.msra.mxu0 %v266
    %v268 = vand.u32 %v84, 4294901760
    %269 = vmatpush.msra.mxu0 %v268
    %v270 = vand.u32 %v83, 4294901760
    %271 = vmatpush.msra.mxu0 %v270
    %v272 = vand.u32 %v82, 4294901760
    %273 = vmatpush.msra.mxu0 %v272
    %v274 = vand.u32 %v92, 4294901760
    %275 = vmatmul.f32.gmra.mxu0 %v274
    %v276 = vpop.f32.mrf.mxu0
    %v277 = vadd.f32 %v252, %v276
    %278 = vdwg.mxu0
    %v280 = vsel %vm90, %v81, 0
    %282 = vmatpush.msra.mxu0 0.0
    %283 = vmatpush.msra.mxu0 0.0
    %284 = vmatpush.msra.mxu0 0.0
    %285 = vmatpush.msra.mxu0 0.0
    %286 = vmatpush.msra.mxu0 0.0
    %287 = vmatpush.msra.mxu0 0.0
    %288 = vmatpush.msra.mxu0 0.0
    %289 = vmatpush.msra.mxu0 0.0
    %290 = vmatpush.msra.mxu0 0.0
    %291 = vmatpush.msra.mxu0 0.0
    %292 = vmatpush.msra.mxu0 0.0
    %293 = vmatpush.msra.mxu0 0.0
    %v294 = vand.u32 %v89, 4294901760
    %295 = vmatpush.msra.mxu0 %v294
    %v296 = vand.u32 %v88, 4294901760
    %297 = vmatpush.msra.mxu0 %v296
    %v298 = vand.u32 %v87, 4294901760
    %299 = vmatpush.msra.mxu0 %v298
    %v300 = vand.u32 %v86, 4294901760
    %301 = vmatpush.msra.mxu0 %v300
    %v302 = vand.u32 %v280, 4294901760
    %v303 = vsub.f32 %v280, %v302
    %v304 = vand.u32 %v303, 4294901760
    %v305 = vsub.f32 %v303, %v304
    %v306 = vand.u32 %v305, 4294901760
    %307 = vmatmul.f32.gmra.mxu0 %v306
    %v308 = vpop.f32.mrf.mxu0
    %v309 = vadd.f32 0.0, %v308
    %310 = vdwg.mxu0
    %311 = vmatpush.msra.mxu0 0.0
    %312 = vmatpush.msra.mxu0 0.0
    %313 = vmatpush.msra.mxu0 0.0
    %314 = vmatpush.msra.mxu0 0.0
    %315 = vmatpush.msra.mxu0 0.0
    %316 = vmatpush.msra.mxu0 0.0
    %317 = vmatpush.msra.mxu0 0.0
    %318 = vmatpush.msra.mxu0 0.0
    %319 = vmatpush.msra.mxu0 0.0
    %320 = vmatpush.msra.mxu0 0.0
    %321 = vmatpush.msra.mxu0 0.0
    %322 = vmatpush.msra.mxu0 0.0
    %v323 = vand.u32 %v89, 4294901760
    %v324 = vsub.f32 %v89, %v323
    %v325 = vand.u32 %v324, 4294901760
    %v326 = vsub.f32 %v324, %v325
    %v327 = vand.u32 %v326, 4294901760
    %328 = vmatpush.msra.mxu0 %v327
    %v329 = vand.u32 %v88, 4294901760
    %v330 = vsub.f32 %v88, %v329
    %v331 = vand.u32 %v330, 4294901760
    %v332 = vsub.f32 %v330, %v331
    %v333 = vand.u32 %v332, 4294901760
    %334 = vmatpush.msra.mxu0 %v333
    %v335 = vand.u32 %v87, 4294901760
    %v336 = vsub.f32 %v87, %v335
    %v337 = vand.u32 %v336, 4294901760
    %v338 = vsub.f32 %v336, %v337
    %v339 = vand.u32 %v338, 4294901760
    %340 = vmatpush.msra.mxu0 %v339
    %v341 = vand.u32 %v86, 4294901760
    %v342 = vsub.f32 %v86, %v341
    %v343 = vand.u32 %v342, 4294901760
    %v344 = vsub.f32 %v342, %v343
    %v345 = vand.u32 %v344, 4294901760
    %346 = vmatpush.msra.mxu0 %v345
    %v347 = vand.u32 %v280, 4294901760
    %348 = vmatmul.f32.gmra.mxu0 %v347
    %v349 = vpop.f32.mrf.mxu0
    %v350 = vadd.f32 %v309, %v349
    %351 = vdwg.mxu0
    %352 = vmatpush.msra.mxu0 0.0
    %353 = vmatpush.msra.mxu0 0.0
    %354 = vmatpush.msra.mxu0 0.0
    %355 = vmatpush.msra.mxu0 0.0
    %356 = vmatpush.msra.mxu0 0.0
    %357 = vmatpush.msra.mxu0 0.0
    %358 = vmatpush.msra.mxu0 0.0
    %359 = vmatpush.msra.mxu0 0.0
    %360 = vmatpush.msra.mxu0 0.0
    %361 = vmatpush.msra.mxu0 0.0
    %362 = vmatpush.msra.mxu0 0.0
    %363 = vmatpush.msra.mxu0 0.0
    %v364 = vand.u32 %v89, 4294901760
    %v365 = vsub.f32 %v89, %v364
    %366 = vmatpush.msra.mxu0 %v365
    %v367 = vand.u32 %v88, 4294901760
    %v368 = vsub.f32 %v88, %v367
    %369 = vmatpush.msra.mxu0 %v368
    %v370 = vand.u32 %v87, 4294901760
    %v371 = vsub.f32 %v87, %v370
    %372 = vmatpush.msra.mxu0 %v371
    %v373 = vand.u32 %v86, 4294901760
    %v374 = vsub.f32 %v86, %v373
    %375 = vmatpush.msra.mxu0 %v374
    %v376 = vand.u32 %v280, 4294901760
    %v377 = vsub.f32 %v280, %v376
    %378 = vmatmul.f32.gmra.mxu0 %v377
    %v379 = vpop.f32.mrf.mxu0
    %v380 = vadd.f32 %v350, %v379
    %381 = vdwg.mxu0
    %382 = vmatpush.msra.mxu0 0.0
    %383 = vmatpush.msra.mxu0 0.0
    %384 = vmatpush.msra.mxu0 0.0
    %385 = vmatpush.msra.mxu0 0.0
    %386 = vmatpush.msra.mxu0 0.0
    %387 = vmatpush.msra.mxu0 0.0
    %388 = vmatpush.msra.mxu0 0.0
    %389 = vmatpush.msra.mxu0 0.0
    %390 = vmatpush.msra.mxu0 0.0
    %391 = vmatpush.msra.mxu0 0.0
    %392 = vmatpush.msra.mxu0 0.0
    %393 = vmatpush.msra.mxu0 0.0
    %v394 = vand.u32 %v89, 4294901760
    %395 = vmatpush.msra.mxu0 %v394
    %v396 = vand.u32 %v88, 4294901760
    %397 = vmatpush.msra.mxu0 %v396
    %v398 = vand.u32 %v87, 4294901760
    %399 = vmatpush.msra.mxu0 %v398
    %v400 = vand.u32 %v86, 4294901760
    %401 = vmatpush.msra.mxu0 %v400
    %v402 = vand.u32 %v280, 4294901760
    %v403 = vsub.f32 %v280, %v402
    %v404 = vand.u32 %v403, 4294901760
    %405 = vmatmul.f32.gmra.mxu0 %v404
    %v406 = vpop.f32.mrf.mxu0
    %v407 = vadd.f32 %v380, %v406
    %408 = vdwg.mxu0
    %409 = vmatpush.msra.mxu0 0.0
    %410 = vmatpush.msra.mxu0 0.0
    %411 = vmatpush.msra.mxu0 0.0
    %412 = vmatpush.msra.mxu0 0.0
    %413 = vmatpush.msra.mxu0 0.0
    %414 = vmatpush.msra.mxu0 0.0
    %415 = vmatpush.msra.mxu0 0.0
    %416 = vmatpush.msra.mxu0 0.0
    %417 = vmatpush.msra.mxu0 0.0
    %418 = vmatpush.msra.mxu0 0.0
    %419 = vmatpush.msra.mxu0 0.0
    %420 = vmatpush.msra.mxu0 0.0
    %v421 = vand.u32 %v89, 4294901760
    %v422 = vsub.f32 %v89, %v421
    %v423 = vand.u32 %v422, 4294901760
    %424 = vmatpush.msra.mxu0 %v423
    %v425 = vand.u32 %v88, 4294901760
    %v426 = vsub.f32 %v88, %v425
    %v427 = vand.u32 %v426, 4294901760
    %428 = vmatpush.msra.mxu0 %v427
    %v429 = vand.u32 %v87, 4294901760
    %v430 = vsub.f32 %v87, %v429
    %v431 = vand.u32 %v430, 4294901760
    %432 = vmatpush.msra.mxu0 %v431
    %v433 = vand.u32 %v86, 4294901760
    %v434 = vsub.f32 %v86, %v433
    %v435 = vand.u32 %v434, 4294901760
    %436 = vmatpush.msra.mxu0 %v435
    %v437 = vand.u32 %v280, 4294901760
    %438 = vmatmul.f32.gmra.mxu0 %v437
    %v439 = vpop.f32.mrf.mxu0
    %v440 = vadd.f32 %v407, %v439
    %441 = vdwg.mxu0
    %442 = vmatpush.msra.mxu0 0.0
    %443 = vmatpush.msra.mxu0 0.0
    %444 = vmatpush.msra.mxu0 0.0
    %445 = vmatpush.msra.mxu0 0.0
    %446 = vmatpush.msra.mxu0 0.0
    %447 = vmatpush.msra.mxu0 0.0
    %448 = vmatpush.msra.mxu0 0.0
    %449 = vmatpush.msra.mxu0 0.0
    %450 = vmatpush.msra.mxu0 0.0
    %451 = vmatpush.msra.mxu0 0.0
    %452 = vmatpush.msra.mxu0 0.0
    %453 = vmatpush.msra.mxu0 0.0
    %v454 = vand.u32 %v89, 4294901760
    %455 = vmatpush.msra.mxu0 %v454
    %v456 = vand.u32 %v88, 4294901760
    %457 = vmatpush.msra.mxu0 %v456
    %v458 = vand.u32 %v87, 4294901760
    %459 = vmatpush.msra.mxu0 %v458
    %v460 = vand.u32 %v86, 4294901760
    %461 = vmatpush.msra.mxu0 %v460
    %v462 = vand.u32 %v280, 4294901760
    %463 = vmatmul.f32.gmra.mxu0 %v462
    %v464 = vpop.f32.mrf.mxu0
    %v465 = vadd.f32 %v440, %v464
    %466 = vdwg.mxu0
    %467 = vmatpush.msra.mxu0 0.0
    %468 = vmatpush.msra.mxu0 0.0
    %469 = vmatpush.msra.mxu0 0.0
    %470 = vmatpush.msra.mxu0 0.0
    %471 = vmatpush.msra.mxu0 0.0
    %472 = vmatpush.msra.mxu0 0.0
    %473 = vmatpush.msra.mxu0 0.0
    %474 = vmatpush.msra.mxu0 0.0
    %475 = vmatpush.msra.mxu0 0.0
    %476 = vmatpush.msra.mxu0 0.0
    %477 = vmatpush.msra.mxu0 0.0
    %478 = vmatpush.msra.mxu0 0.0
    %v479 = vand.u32 %v89, 4294901760
    %480 = vmatpush.msra.mxu0 %v479
    %v481 = vand.u32 %v88, 4294901760
    %482 = vmatpush.msra.mxu0 %v481
    %v483 = vand.u32 %v87, 4294901760
    %484 = vmatpush.msra.mxu0 %v483
    %v485 = vand.u32 %v86, 4294901760
    %486 = vmatpush.msra.mxu0 %v485
    %v487 = vand.u32 %v92, 4294901760
    %v488 = vsub.f32 %v92, %v487
    %v489 = vand.u32 %v488, 4294901760
    %v490 = vsub.f32 %v488, %v489
    %v491 = vand.u32 %v490, 4294901760
    %492 = vmatmul.f32.gmra.mxu0 %v491
    %v493 = vpop.f32.mrf.mxu0
    %v494 = vadd.f32 0.0, %v493
    %495 = vdwg.mxu0
    %496 = vmatpush.msra.mxu0 0.0
    %497 = vmatpush.msra.mxu0 0.0
    %498 = vmatpush.msra.mxu0 0.0
    %499 = vmatpush.msra.mxu0 0.0
    %500 = vmatpush.msra.mxu0 0.0
    %501 = vmatpush.msra.mxu0 0.0
    %502 = vmatpush.msra.mxu0 0.0
    %503 = vmatpush.msra.mxu0 0.0
    %504 = vmatpush.msra.mxu0 0.0
    %505 = vmatpush.msra.mxu0 0.0
    %506 = vmatpush.msra.mxu0 0.0
    %507 = vmatpush.msra.mxu0 0.0
    %v508 = vand.u32 %v89, 4294901760
    %v509 = vsub.f32 %v89, %v508
    %v510 = vand.u32 %v509, 4294901760
    %v511 = vsub.f32 %v509, %v510
    %v512 = vand.u32 %v511, 4294901760
    %513 = vmatpush.msra.mxu0 %v512
    %v514 = vand.u32 %v88, 4294901760
    %v515 = vsub.f32 %v88, %v514
    %v516 = vand.u32 %v515, 4294901760
    %v517 = vsub.f32 %v515, %v516
    %v518 = vand.u32 %v517, 4294901760
    %519 = vmatpush.msra.mxu0 %v518
    %v520 = vand.u32 %v87, 4294901760
    %v521 = vsub.f32 %v87, %v520
    %v522 = vand.u32 %v521, 4294901760
    %v523 = vsub.f32 %v521, %v522
    %v524 = vand.u32 %v523, 4294901760
    %525 = vmatpush.msra.mxu0 %v524
    %v526 = vand.u32 %v86, 4294901760
    %v527 = vsub.f32 %v86, %v526
    %v528 = vand.u32 %v527, 4294901760
    %v529 = vsub.f32 %v527, %v528
    %v530 = vand.u32 %v529, 4294901760
    %531 = vmatpush.msra.mxu0 %v530
    %v532 = vand.u32 %v92, 4294901760
    %533 = vmatmul.f32.gmra.mxu0 %v532
    %v534 = vpop.f32.mrf.mxu0
    %v535 = vadd.f32 %v494, %v534
    %536 = vdwg.mxu0
    %537 = vmatpush.msra.mxu0 0.0
    %538 = vmatpush.msra.mxu0 0.0
    %539 = vmatpush.msra.mxu0 0.0
    %540 = vmatpush.msra.mxu0 0.0
    %541 = vmatpush.msra.mxu0 0.0
    %542 = vmatpush.msra.mxu0 0.0
    %543 = vmatpush.msra.mxu0 0.0
    %544 = vmatpush.msra.mxu0 0.0
    %545 = vmatpush.msra.mxu0 0.0
    %546 = vmatpush.msra.mxu0 0.0
    %547 = vmatpush.msra.mxu0 0.0
    %548 = vmatpush.msra.mxu0 0.0
    %v549 = vand.u32 %v89, 4294901760
    %v550 = vsub.f32 %v89, %v549
    %551 = vmatpush.msra.mxu0 %v550
    %v552 = vand.u32 %v88, 4294901760
    %v553 = vsub.f32 %v88, %v552
    %554 = vmatpush.msra.mxu0 %v553
    %v555 = vand.u32 %v87, 4294901760
    %v556 = vsub.f32 %v87, %v555
    %557 = vmatpush.msra.mxu0 %v556
    %v558 = vand.u32 %v86, 4294901760
    %v559 = vsub.f32 %v86, %v558
    %560 = vmatpush.msra.mxu0 %v559
    %v561 = vand.u32 %v92, 4294901760
    %v562 = vsub.f32 %v92, %v561
    %563 = vmatmul.f32.gmra.mxu0 %v562
    %v564 = vpop.f32.mrf.mxu0
    %v565 = vadd.f32 %v535, %v564
    %566 = vdwg.mxu0
    %567 = vmatpush.msra.mxu0 0.0
    %568 = vmatpush.msra.mxu0 0.0
    %569 = vmatpush.msra.mxu0 0.0
    %570 = vmatpush.msra.mxu0 0.0
    %571 = vmatpush.msra.mxu0 0.0
    %572 = vmatpush.msra.mxu0 0.0
    %573 = vmatpush.msra.mxu0 0.0
    %574 = vmatpush.msra.mxu0 0.0
    %575 = vmatpush.msra.mxu0 0.0
    %576 = vmatpush.msra.mxu0 0.0
    %577 = vmatpush.msra.mxu0 0.0
    %578 = vmatpush.msra.mxu0 0.0
    %v579 = vand.u32 %v89, 4294901760
    %580 = vmatpush.msra.mxu0 %v579
    %v581 = vand.u32 %v88, 4294901760
    %582 = vmatpush.msra.mxu0 %v581
    %v583 = vand.u32 %v87, 4294901760
    %584 = vmatpush.msra.mxu0 %v583
    %v585 = vand.u32 %v86, 4294901760
    %586 = vmatpush.msra.mxu0 %v585
    %v587 = vand.u32 %v92, 4294901760
    %v588 = vsub.f32 %v92, %v587
    %v589 = vand.u32 %v588, 4294901760
    %590 = vmatmul.f32.gmra.mxu0 %v589
    %v591 = vpop.f32.mrf.mxu0
    %v592 = vadd.f32 %v565, %v591
    %593 = vdwg.mxu0
    %594 = vmatpush.msra.mxu0 0.0
    %595 = vmatpush.msra.mxu0 0.0
    %596 = vmatpush.msra.mxu0 0.0
    %597 = vmatpush.msra.mxu0 0.0
    %598 = vmatpush.msra.mxu0 0.0
    %599 = vmatpush.msra.mxu0 0.0
    %600 = vmatpush.msra.mxu0 0.0
    %601 = vmatpush.msra.mxu0 0.0
    %602 = vmatpush.msra.mxu0 0.0
    %603 = vmatpush.msra.mxu0 0.0
    %604 = vmatpush.msra.mxu0 0.0
    %605 = vmatpush.msra.mxu0 0.0
    %v606 = vand.u32 %v89, 4294901760
    %v607 = vsub.f32 %v89, %v606
    %v608 = vand.u32 %v607, 4294901760
    %609 = vmatpush.msra.mxu0 %v608
    %v610 = vand.u32 %v88, 4294901760
    %v611 = vsub.f32 %v88, %v610
    %v612 = vand.u32 %v611, 4294901760
    %613 = vmatpush.msra.mxu0 %v612
    %v614 = vand.u32 %v87, 4294901760
    %v615 = vsub.f32 %v87, %v614
    %v616 = vand.u32 %v615, 4294901760
    %617 = vmatpush.msra.mxu0 %v616
    %v618 = vand.u32 %v86, 4294901760
    %v619 = vsub.f32 %v86, %v618
    %v620 = vand.u32 %v619, 4294901760
    %621 = vmatpush.msra.mxu0 %v620
    %v622 = vand.u32 %v92, 4294901760
    %623 = vmatmul.f32.gmra.mxu0 %v622
    %v624 = vpop.f32.mrf.mxu0
    %v625 = vadd.f32 %v592, %v624
    %626 = vdwg.mxu0
    %627 = vmatpush.msra.mxu0 0.0
    %628 = vmatpush.msra.mxu0 0.0
    %629 = vmatpush.msra.mxu0 0.0
    %630 = vmatpush.msra.mxu0 0.0
    %631 = vmatpush.msra.mxu0 0.0
    %632 = vmatpush.msra.mxu0 0.0
    %633 = vmatpush.msra.mxu0 0.0
    %634 = vmatpush.msra.mxu0 0.0
    %635 = vmatpush.msra.mxu0 0.0
    %636 = vmatpush.msra.mxu0 0.0
    %637 = vmatpush.msra.mxu0 0.0
    %638 = vmatpush.msra.mxu0 0.0
    %v639 = vand.u32 %v89, 4294901760
    %640 = vmatpush.msra.mxu0 %v639
    %v641 = vand.u32 %v88, 4294901760
    %642 = vmatpush.msra.mxu0 %v641
    %v643 = vand.u32 %v87, 4294901760
    %644 = vmatpush.msra.mxu0 %v643
    %v645 = vand.u32 %v86, 4294901760
    %646 = vmatpush.msra.mxu0 %v645
    %v647 = vand.u32 %v92, 4294901760
    %648 = vmatmul.f32.gmra.mxu0 %v647
    %v649 = vpop.f32.mrf.mxu0
    %v650 = vadd.f32 %v625, %v649
    %651 = vdwg.mxu0
    %v652 = vsub.f32 %v277, %v465
    %653 = vst [vmem:[#allocation10] sm:$0xff] %v652
    %654 = vmatpush.msra.mxu0 0.0
    %655 = vmatpush.msra.mxu0 0.0
    %656 = vmatpush.msra.mxu0 0.0
    %657 = vmatpush.msra.mxu0 0.0
    %658 = vmatpush.msra.mxu0 0.0
    %659 = vmatpush.msra.mxu0 0.0
    %660 = vmatpush.msra.mxu0 0.0
    %661 = vmatpush.msra.mxu0 0.0
    %662 = vmatpush.msra.mxu0 0.0
    %663 = vmatpush.msra.mxu0 0.0
    %664 = vmatpush.msra.mxu0 0.0
    %665 = vmatpush.msra.mxu0 0.0
    %v666 = vand.u32 %v85, 4294901760
    %667 = vmatpush.msra.mxu0 %v666
    %v668 = vand.u32 %v84, 4294901760
    %669 = vmatpush.msra.mxu0 %v668
    %v670 = vand.u32 %v83, 4294901760
    %671 = vmatpush.msra.mxu0 %v670
    %v672 = vand.u32 %v82, 4294901760
    %673 = vmatpush.msra.mxu0 %v672
    %v674 = vand.u32 %v280, 4294901760
    %v675 = vsub.f32 %v280, %v674
    %v676 = vand.u32 %v675, 4294901760
    %v677 = vsub.f32 %v675, %v676
    %v678 = vand.u32 %v677, 4294901760
    %679 = vmatmul.f32.gmra.mxu0 %v678
    %v680 = vpop.f32.mrf.mxu0
    %v681 = vadd.f32 %v650, %v680
    %682 = vdwg.mxu0
    %683 = vmatpush.msra.mxu0 0.0
    %684 = vmatpush.msra.mxu0 0.0
    %685 = vmatpush.msra.mxu0 0.0
    %686 = vmatpush.msra.mxu0 0.0
    %687 = vmatpush.msra.mxu0 0.0
    %688 = vmatpush.msra.mxu0 0.0
    %689 = vmatpush.msra.mxu0 0.0
    %690 = vmatpush.msra.mxu0 0.0
    %691 = vmatpush.msra.mxu0 0.0
    %692 = vmatpush.msra.mxu0 0.0
    %693 = vmatpush.msra.mxu0 0.0
    %694 = vmatpush.msra.mxu0 0.0
    %v695 = vand.u32 %v85, 4294901760
    %v696 = vsub.f32 %v85, %v695
    %v697 = vand.u32 %v696, 4294901760
    %v698 = vsub.f32 %v696, %v697
    %v699 = vand.u32 %v698, 4294901760
    %700 = vmatpush.msra.mxu0 %v699
    %v701 = vand.u32 %v84, 4294901760
    %v702 = vsub.f32 %v84, %v701
    %v703 = vand.u32 %v702, 4294901760
    %v704 = vsub.f32 %v702, %v703
    %v705 = vand.u32 %v704, 4294901760
    %706 = vmatpush.msra.mxu0 %v705
    %v707 = vand.u32 %v83, 4294901760
    %v708 = vsub.f32 %v83, %v707
    %v709 = vand.u32 %v708, 4294901760
    %v710 = vsub.f32 %v708, %v709
    %v711 = vand.u32 %v710, 4294901760
    %712 = vmatpush.msra.mxu0 %v711
    %v713 = vand.u32 %v82, 4294901760
    %v714 = vsub.f32 %v82, %v713
    %v715 = vand.u32 %v714, 4294901760
    %v716 = vsub.f32 %v714, %v715
    %v717 = vand.u32 %v716, 4294901760
    %718 = vmatpush.msra.mxu0 %v717
    %v719 = vand.u32 %v280, 4294901760
    %720 = vmatmul.f32.gmra.mxu0 %v719
    %v721 = vpop.f32.mrf.mxu0
    %v722 = vadd.f32 %v681, %v721
    %723 = vdwg.mxu0
    %724 = vmatpush.msra.mxu0 0.0
    %725 = vmatpush.msra.mxu0 0.0
    %726 = vmatpush.msra.mxu0 0.0
    %727 = vmatpush.msra.mxu0 0.0
    %728 = vmatpush.msra.mxu0 0.0
    %729 = vmatpush.msra.mxu0 0.0
    %730 = vmatpush.msra.mxu0 0.0
    %731 = vmatpush.msra.mxu0 0.0
    %732 = vmatpush.msra.mxu0 0.0
    %733 = vmatpush.msra.mxu0 0.0
    %734 = vmatpush.msra.mxu0 0.0
    %735 = vmatpush.msra.mxu0 0.0
    %v736 = vand.u32 %v85, 4294901760
    %v737 = vsub.f32 %v85, %v736
    %738 = vmatpush.msra.mxu0 %v737
    %v739 = vand.u32 %v84, 4294901760
    %v740 = vsub.f32 %v84, %v739
    %741 = vmatpush.msra.mxu0 %v740
    %v742 = vand.u32 %v83, 4294901760
    %v743 = vsub.f32 %v83, %v742
    %744 = vmatpush.msra.mxu0 %v743
    %v745 = vand.u32 %v82, 4294901760
    %v746 = vsub.f32 %v82, %v745
    %747 = vmatpush.msra.mxu0 %v746
    %v748 = vand.u32 %v280, 4294901760
    %v749 = vsub.f32 %v280, %v748
    %750 = vmatmul.f32.gmra.mxu0 %v749
    %v751 = vpop.f32.mrf.mxu0
    %v752 = vadd.f32 %v722, %v751
    %753 = vdwg.mxu0
    %754 = vmatpush.msra.mxu0 0.0
    %755 = vmatpush.msra.mxu0 0.0
    %756 = vmatpush.msra.mxu0 0.0
    %757 = vmatpush.msra.mxu0 0.0
    %758 = vmatpush.msra.mxu0 0.0
    %759 = vmatpush.msra.mxu0 0.0
    %760 = vmatpush.msra.mxu0 0.0
    %761 = vmatpush.msra.mxu0 0.0
    %762 = vmatpush.msra.mxu0 0.0
    %763 = vmatpush.msra.mxu0 0.0
    %764 = vmatpush.msra.mxu0 0.0
    %765 = vmatpush.msra.mxu0 0.0
    %v766 = vand.u32 %v85, 4294901760
    %767 = vmatpush.msra.mxu0 %v766
    %v768 = vand.u32 %v84, 4294901760
    %769 = vmatpush.msra.mxu0 %v768
    %v770 = vand.u32 %v83, 4294901760
    %771 = vmatpush.msra.mxu0 %v770
    %v772 = vand.u32 %v82, 4294901760
    %773 = vmatpush.msra.mxu0 %v772
    %v774 = vand.u32 %v280, 4294901760
    %v775 = vsub.f32 %v280, %v774
    %v776 = vand.u32 %v775, 4294901760
    %777 = vmatmul.f32.gmra.mxu0 %v776
    %v778 = vpop.f32.mrf.mxu0
    %v779 = vadd.f32 %v752, %v778
    %780 = vdwg.mxu0
    %781 = vmatpush.msra.mxu0 0.0
    %782 = vmatpush.msra.mxu0 0.0
    %783 = vmatpush.msra.mxu0 0.0
    %784 = vmatpush.msra.mxu0 0.0
    %785 = vmatpush.msra.mxu0 0.0
    %786 = vmatpush.msra.mxu0 0.0
    %787 = vmatpush.msra.mxu0 0.0
    %788 = vmatpush.msra.mxu0 0.0
    %789 = vmatpush.msra.mxu0 0.0
    %790 = vmatpush.msra.mxu0 0.0
    %791 = vmatpush.msra.mxu0 0.0
    %792 = vmatpush.msra.mxu0 0.0
    %v793 = vand.u32 %v85, 4294901760
    %v794 = vsub.f32 %v85, %v793
    %v795 = vand.u32 %v794, 4294901760
    %796 = vmatpush.msra.mxu0 %v795
    %v797 = vand.u32 %v84, 4294901760
    %v798 = vsub.f32 %v84, %v797
    %v799 = vand.u32 %v798, 4294901760
    %800 = vmatpush.msra.mxu0 %v799
    %v801 = vand.u32 %v83, 4294901760
    %v802 = vsub.f32 %v83, %v801
    %v803 = vand.u32 %v802, 4294901760
    %804 = vmatpush.msra.mxu0 %v803
    %v805 = vand.u32 %v82, 4294901760
    %v806 = vsub.f32 %v82, %v805
    %v807 = vand.u32 %v806, 4294901760
    %808 = vmatpush.msra.mxu0 %v807
    %v809 = vand.u32 %v280, 4294901760
    %810 = vmatmul.f32.gmra.mxu0 %v809
    %v811 = vpop.f32.mrf.mxu0
    %v812 = vadd.f32 %v779, %v811
    %813 = vdwg.mxu0
    %814 = vmatpush.msra.mxu0 0.0
    %815 = vmatpush.msra.mxu0 0.0
    %816 = vmatpush.msra.mxu0 0.0
    %817 = vmatpush.msra.mxu0 0.0
    %818 = vmatpush.msra.mxu0 0.0
    %819 = vmatpush.msra.mxu0 0.0
    %820 = vmatpush.msra.mxu0 0.0
    %821 = vmatpush.msra.mxu0 0.0
    %822 = vmatpush.msra.mxu0 0.0
    %823 = vmatpush.msra.mxu0 0.0
    %824 = vmatpush.msra.mxu0 0.0
    %825 = vmatpush.msra.mxu0 0.0
    %v826 = vand.u32 %v85, 4294901760
    %827 = vmatpush.msra.mxu0 %v826
    %v828 = vand.u32 %v84, 4294901760
    %829 = vmatpush.msra.mxu0 %v828
    %v830 = vand.u32 %v83, 4294901760
    %831 = vmatpush.msra.mxu0 %v830
    %v832 = vand.u32 %v82, 4294901760
    %833 = vmatpush.msra.mxu0 %v832
    %v834 = vand.u32 %v280, 4294901760
    %835 = vmatmul.f32.gmra.mxu0 %v834
    %v836 = vpop.f32.mrf.mxu0
    %v837 = vadd.f32 %v812, %v836
    %838 = vdwg.mxu0
    %839 = vst [vmem:[#allocation11] sm:$0xff] %v837
    // Predicated region
    $region34: #{tpu_custom_call.1} parent=1 // pred_check
      _
    $region35: #{tpu_custom_call.1} parent=1 // pred_check_branch
      %841 = sbr.rel (0) target = $region37
    $region36: #{tpu_custom_call.1} parent=1 // pred_region
      %843 = vsyncadd [#allocation4], 0
      %s845 = sshll.u32 [#allocation10], 4
      %s846 = int_to_ptr.vmem [resolvable:$true] %s845
      %s847 = sshll.u32 %s4, 4
      %s848 = int_to_ptr.hbm [resolvable:$true] %s847
      %850 = dma.vmem_to_hbm [thread:$0]  %s846, 128, %s848, [#allocation4]
    $region37: #{tpu_custom_call.1} parent=1 // pred_fallthru
      _
    // Predicated region
    $region38: #{tpu_custom_call.1} parent=1 // pred_check
      _
    $region39: #{tpu_custom_call.1} parent=1 // pred_check_branch
      %852 = sbr.rel (0) target = $region41
    $region40: #{tpu_custom_call.1} parent=1 // pred_region
      %854 = vsyncadd [#allocation12], 0
      %s856 = sshll.u32 [#allocation11], 4
      %s857 = int_to_ptr.vmem [resolvable:$true] %s856
      %s858 = sshll.u32 %s5, 4
      %s859 = int_to_ptr.hbm [resolvable:$true] %s858
      %861 = dma.vmem_to_hbm [thread:$0]  %s857, 128, %s859, [#allocation12]
    $region41: #{tpu_custom_call.1} parent=1 // pred_fallthru
      _
    // Predicated region
    $region42: #{tpu_custom_call.1} parent=1 // pred_check
      _
    $region43: #{tpu_custom_call.1} parent=1 // pred_check_branch
      %863 = sbr.rel (0) target = $region45
    $region44: #{tpu_custom_call.1} parent=1 // pred_region
      %865 = dma.done [#allocation4], 128
    $region45: #{tpu_custom_call.1} parent=1 // pred_fallthru
      _
    // Predicated region
    $region46: #{tpu_custom_call.1} parent=1 // pred_check
      _
    $region47: #{tpu_custom_call.1} parent=1 // pred_check_branch
      %867 = sbr.rel (0) target = $region49
    $region48: #{tpu_custom_call.1} parent=1 // pred_region
      %869 = dma.done [#allocation12], 128
    $region49: #{tpu_custom_call.1} parent=1 // pred_fallthru
      _
    %870 = vsyncpa [#allocation3], 1
    %871 = vsyncpa [#allocation6], 1
    %872 = vsyncpa [#allocation9], 1
    %873 = vsyncpa [#allocation4], 1
    %874 = vsyncpa [#allocation12], 1

</llo_original>
